<compile_context>
chip_gen: v7x
topology: tpu7x:2x2x1
jax: 0.10.0
libtpu: 0.0.40
codegen_flags: <defaults>
</compile_context>

<pallas_src>
import functools

import jax
import jax.numpy as jnp
from jax.experimental import pallas as pl
from jax.experimental.pallas import tpu as pltpu

_LANE = 128
_SUBLANE = 8


def _round_up(x, m):
    return (x + m - 1) // m * m


def _cdiv(a, b):
    return (a + b - 1) // b


def _tpu_generation():
    """Best-effort TPU generation string ('v5', 'v6', 'v7', ...) or None."""
    try:
        kind = jax.devices()[0].device_kind.lower()
    except Exception:
        return None
    for g in ("v7", "v6", "v5", "v4", "v3", "v2"):
        if g in kind:
            return g
    return None


def _sigmoid(x):
    # sigmoid(x) = 0.5 * tanh(0.5 * x) + 0.5
    # One EUP push (tanh); the mul/adds ride in the VALU slots which have slack.
    half = jnp.asarray(0.5, dtype=x.dtype)
    return half * jnp.tanh(half * x) + half


def _mlp_kernel(x_ref, w1_ref, b1_ref, w2_ref, b2_ref, o_ref, *, act_dtype):
    # Cast the streamed activation tile for the MXU inside the kernel: avoids a
    # separate wrapper-side pad/cast pass over the activation tensor in HBM.
    x = x_ref[...]
    if x.dtype != jnp.bfloat16:
        x = x.astype(jnp.bfloat16)

    # Layer 1: bf16 MXU matmul, f32 accumulation; bias + sigmoid in act_dtype
    # (bf16 on v6e/v7x, f32 on v5e and older where VPU/EUP lack bf16).
    h = jnp.dot(x, w1_ref[...], preferred_element_type=jnp.float32)
    h = _sigmoid(h.astype(act_dtype) + b1_ref[...].astype(act_dtype))

    # Layer 2: feed the hidden back to the MXU in bf16, accumulate in f32.
    y = jnp.dot(h.astype(jnp.bfloat16), w2_ref[...],
                preferred_element_type=jnp.float32)
    y = _sigmoid(y.astype(act_dtype) + b2_ref[...].astype(act_dtype))
    o_ref[...] = y.astype(o_ref.dtype)


def prepare_params(w1, b1, w2, b2):
    """Pad/cast the (small) parameters ONCE, outside the per-call path.

    Lane-dense padding: H and O are zero-padded up to multiples of 128 so the
    MXU sees full 128-wide tiles and the output store is an unmasked vst.
    The input dim D is left unpadded (the kernel block uses the full dim).

    INVARIANT (required for correctness of the padding trick): w2_p[H:, :] must
    be exactly zero.  Padded hidden columns evaluate to sigmoid(0) = 0.5 inside
    the kernel and rely on these zero rows to contribute nothing to real
    outputs.  This is guaranteed by constructing w2_p from jnp.zeros below.
    """
    D, H = w1.shape
    H2, O = w2.shape
    assert H2 == H, "weight shapes inconsistent"

    H_pad = _round_up(H, _LANE)
    O_pad = _round_up(O, _LANE)

    w1_p = jnp.zeros((D, H_pad), jnp.bfloat16).at[:, :H].set(
        jnp.asarray(w1).astype(jnp.bfloat16))
    w2_p = jnp.zeros((H_pad, O_pad), jnp.bfloat16).at[:H, :O].set(
        jnp.asarray(w2).astype(jnp.bfloat16))
    b1_p = jnp.zeros((1, H_pad), jnp.float32).at[:, :H].set(
        jnp.asarray(b1, jnp.float32).reshape(1, H))
    b2_p = jnp.zeros((1, O_pad), jnp.float32).at[:, :O].set(
        jnp.asarray(b2, jnp.float32).reshape(1, O))

    return {"w1": w1_p, "b1": b1_p, "w2": w2_p, "b2": b2_p, "dims": (D, H, O)}


def neural_net_forward(data, params, *, out_dtype=jnp.bfloat16,
                       max_batch_tile=None):
    """Fused 2-layer MLP forward.  `data` may have any shape with a leading
    batch dim; it is flattened like torch's `.view(B, -1)`.

    NOTE (precision): MXU operands are bf16 and the default output dtype is
    bf16; accumulation is f32.  Pass out_dtype=jnp.float32 for an f32 output.
    """
    gen = _tpu_generation()
    act_dtype = jnp.bfloat16 if gen in ("v6", "v7") else jnp.float32
    if max_batch_tile is None:
        # 128 MiB VMEM on v5e/v6e -> bigger tiles amortize grid-step overhead;
        # v7x only has 64 MiB, keep the cap at 512 there (and when unknown).
        max_batch_tile = 512 if gen in (None, "v7") else 1024

    w1_p, b1_p, w2_p, b2_p = params["w1"], params["b1"], params["w2"], params["b2"]
    D, H, O = params["dims"]
    H_pad, O_pad = w2_p.shape

    B = data.shape[0]
    x = data.reshape(B, -1)            # torch .view(B, -1); metadata-only
    assert x.shape[1] == D, f"flattened dim {x.shape[1]} != input_dim {D}"

    # ---- Batch tiling --------------------------------------------------------
    # Minimize batch padding (TB = round_up(cdiv(B, nb), 8)) and make sure there
    # are >= 2 tiles when B allows it, so the "parallel" batch axis can shard
    # across v7x's 2 TensorCores (harmless ~0.35us extra step elsewhere).
    nb = max(1, _cdiv(B, max_batch_tile))
    if nb == 1 and B >= 2 * _SUBLANE:
        nb = 2
    TB = _round_up(_cdiv(B, nb), _SUBLANE)
    B_pad = _round_up(B, TB)
    nb = B_pad // TB
    if B_pad != B:
        # Only the batch axis is ever padded; feature dims are passed unpadded.
        x = jnp.pad(x, ((0, B_pad - B), (0, 0)))

    # ---- VMEM budget ---------------------------------------------------------
    # Residents are single-buffered (Buffered(1)); x/out tiles double-buffered.
    x_tile_bytes = TB * D * x.dtype.itemsize
    out_tile_bytes = TB * O_pad * jnp.dtype(out_dtype).itemsize
    resident_bytes = (w1_p.size * 2 + w2_p.size * 2 + b1_p.size * 4 + b2_p.size * 4)
    h_bytes = TB * H_pad * 4
    vmem_limit = min(
        int(2 * (resident_bytes + 2 * x_tile_bytes + 2 * out_tile_bytes + h_bytes))
        + (8 << 20),
        64 << 20,  # fits every generation's physical VMEM (v7x = 64 MiB)
    )

    def resident_spec(shape):
        # Constant index_map -> double-buffering is pure VMEM waste.
        return pl.BlockSpec(shape, lambda i: (0, 0), pipeline_mode=pl.Buffered(1))

    flops = 2 * B_pad * (D * H_pad + H_pad * O_pad)
    transcendentals = B_pad * (H_pad + O_pad)          # one tanh per element
    bytes_accessed = (B_pad * D * x.dtype.itemsize + resident_bytes
                      + B_pad * O_pad * jnp.dtype(out_dtype).itemsize)

    out_p = pl.pallas_call(
        functools.partial(_mlp_kernel, act_dtype=act_dtype),
        out_shape=jax.ShapeDtypeStruct((B_pad, O_pad), out_dtype),
        grid=(nb,),
        in_specs=[
            pl.BlockSpec((TB, D), lambda i: (i, 0)),   # streamed activations (D unpadded)
            resident_spec((D, H_pad)),                 # resident W1 (bf16)
            resident_spec((1, H_pad)),                 # resident b1 (f32)
            resident_spec((H_pad, O_pad)),             # resident W2 (bf16)
            resident_spec((1, O_pad)),                 # resident b2 (f32)
        ],
        out_specs=pl.BlockSpec((TB, O_pad), lambda i: (i, 0)),  # lane-dense store
        compiler_params=pltpu.CompilerParams(
            dimension_semantics=("parallel",),         # batch axis -> both v7x TCs
            vmem_limit_bytes=vmem_limit,
        ),
        cost_estimate=pl.CostEstimate(
            flops=flops,
            transcendentals=transcendentals,
            bytes_accessed=bytes_accessed,
        ),
    )(x, w1_p, b1_p, w2_p, b2_p)

    # Strip batch + lane padding.
    return out_p[:B, :O]


def _reference(data, w1, b1, w2, b2):
    x = data.reshape(data.shape[0], -1).astype(jnp.float32)
    h = jax.nn.sigmoid(x @ w1 + b1)
    return jax.nn.sigmoid(h @ w2 + b2)


if __name__ == "__main__":
    # Small shapes consistent with the module: batch=8, input_dim=64,
    # hidden_dim=32, output_dim=16.
    B, input_dim, hidden_dim, output_dim = 8, 64, 32, 16

    key = jax.random.PRNGKey(0)
    k_x, k_w1, k_w2 = jax.random.split(key, 3)

    data = jax.random.normal(k_x, (B, input_dim), dtype=jnp.float32)
    w1 = jax.random.normal(k_w1, (input_dim, hidden_dim), dtype=jnp.float32)
    w2 = jax.random.normal(k_w2, (hidden_dim, output_dim), dtype=jnp.float32)
    b1 = jnp.full((1, hidden_dim), 1.41, dtype=jnp.float32)
    b2 = jnp.full((1, output_dim), 1.41, dtype=jnp.float32)

    # Parameter pad/cast hoisted out of the per-call path.
    params = prepare_params(w1, b1, w2, b2)

    out = neural_net_forward(data, params)
    out = jax.block_until_ready(out)

    ref = _reference(data, w1, b1, w2, b2)
    assert out.shape == (B, output_dim)
    # bf16 MXU operands + bf16 output => loosened tolerance vs the f32 reference.
    assert jnp.allclose(out.astype(jnp.float32), ref, atol=3e-2, rtol=3e-2), \
        "mismatch vs reference"

    print("KERNEL_OK")
</pallas_src>

<mosaic_0001>
module attributes {stable_mosaic.version = 11 : i64} {
  func.func @_mlp_kernel(%arg0: i32, %arg1: memref<8x64xf32, #tpu.memory_space<vmem>>, %arg2: memref<64x128xbf16, #tpu.memory_space<vmem>>, %arg3: memref<1x128xf32, #tpu.memory_space<vmem>>, %arg4: memref<128x128xbf16, #tpu.memory_space<vmem>>, %arg5: memref<1x128xf32, #tpu.memory_space<vmem>>, %arg6: memref<8x128xbf16, #tpu.memory_space<vmem>>) attributes {dimension_semantics = [#tpu.dimension_semantics<parallel>], iteration_bounds = array<i64: 1>, scalar_prefetch = 0 : i64, scratch_operands = 0 : i64, tpu.core_type = #tpu.core_type<tc>, window_params = [{transform_indices = @transform_0, window_bounds = array<i64: 8, 64>}, {pipeline_mode = #tpu.pipeline_mode<synchronous>, transform_indices = @transform_1, window_bounds = array<i64: 64, 128>}, {pipeline_mode = #tpu.pipeline_mode<synchronous>, transform_indices = @transform_2, window_bounds = array<i64: 1, 128>}, {pipeline_mode = #tpu.pipeline_mode<synchronous>, transform_indices = @transform_3, window_bounds = array<i64: 128, 128>}, {pipeline_mode = #tpu.pipeline_mode<synchronous>, transform_indices = @transform_4, window_bounds = array<i64: 1, 128>}, {transform_indices = @transform_5, window_bounds = array<i64: 8, 128>}]} {
    %c0 = arith.constant 0 : index
    %c0_0 = arith.constant 0 : index
    %0 = vector.load %arg1[%c0, %c0_0] : memref<8x64xf32, #tpu.memory_space<vmem>>, vector<8x64xf32>
    %1 = arith.truncf %0 : vector<8x64xf32> to vector<8x64xbf16>
    %c0_1 = arith.constant 0 : index
    %c0_2 = arith.constant 0 : index
    %2 = vector.load %arg2[%c0_1, %c0_2] : memref<64x128xbf16, #tpu.memory_space<vmem>>, vector<64x128xbf16>
    %cst = arith.constant dense<0.000000e+00> : vector<8x128xf32>
    %3 = tpu.matmul %1, %2, %cst {dimension_numbers = #tpu.dot_dimension_numbers<[1], [0], [0], [1], [0, 0, 1, 1], [], []>} : vector<8x64xbf16>, vector<64x128xbf16>, vector<8x128xf32> -> vector<8x128xf32>
    %c0_3 = arith.constant 0 : index
    %c0_4 = arith.constant 0 : index
    %4 = vector.load %arg3[%c0_3, %c0_4] : memref<1x128xf32, #tpu.memory_space<vmem>>, vector<1x128xf32>
    %5 = vector.broadcast %4 : vector<1x128xf32> to vector<8x128xf32>
    %6 = arith.addf %3, %5 : vector<8x128xf32>
    %cst_5 = arith.constant 5.000000e-01 : f32
    %7 = vector.broadcast %cst_5 : f32 to vector<8x128xf32>
    %8 = arith.mulf %7, %6 : vector<8x128xf32>
    %9 = math.tanh %8 : vector<8x128xf32>
    %cst_6 = arith.constant 5.000000e-01 : f32
    %10 = vector.broadcast %cst_6 : f32 to vector<8x128xf32>
    %11 = arith.mulf %10, %9 : vector<8x128xf32>
    %cst_7 = arith.constant 5.000000e-01 : f32
    %12 = vector.broadcast %cst_7 : f32 to vector<8x128xf32>
    %13 = arith.addf %11, %12 : vector<8x128xf32>
    %14 = arith.truncf %13 : vector<8x128xf32> to vector<8x128xbf16>
    %c0_8 = arith.constant 0 : index
    %c0_9 = arith.constant 0 : index
    %15 = vector.load %arg4[%c0_8, %c0_9] : memref<128x128xbf16, #tpu.memory_space<vmem>>, vector<128x128xbf16>
    %cst_10 = arith.constant dense<0.000000e+00> : vector<8x128xf32>
    %16 = tpu.matmul %14, %15, %cst_10 {dimension_numbers = #tpu.dot_dimension_numbers<[1], [0], [0], [1], [0, 0, 1, 1], [], []>} : vector<8x128xbf16>, vector<128x128xbf16>, vector<8x128xf32> -> vector<8x128xf32>
    %c0_11 = arith.constant 0 : index
    %c0_12 = arith.constant 0 : index
    %17 = vector.load %arg5[%c0_11, %c0_12] : memref<1x128xf32, #tpu.memory_space<vmem>>, vector<1x128xf32>
    %18 = vector.broadcast %17 : vector<1x128xf32> to vector<8x128xf32>
    %19 = arith.addf %16, %18 : vector<8x128xf32>
    %cst_13 = arith.constant 5.000000e-01 : f32
    %20 = vector.broadcast %cst_13 : f32 to vector<8x128xf32>
    %21 = arith.mulf %20, %19 : vector<8x128xf32>
    %22 = math.tanh %21 : vector<8x128xf32>
    %cst_14 = arith.constant 5.000000e-01 : f32
    %23 = vector.broadcast %cst_14 : f32 to vector<8x128xf32>
    %24 = arith.mulf %23, %22 : vector<8x128xf32>
    %cst_15 = arith.constant 5.000000e-01 : f32
    %25 = vector.broadcast %cst_15 : f32 to vector<8x128xf32>
    %26 = arith.addf %24, %25 : vector<8x128xf32>
    %27 = arith.truncf %26 : vector<8x128xf32> to vector<8x128xbf16>
    %c0_16 = arith.constant 0 : index
    %c0_17 = arith.constant 0 : index
    %28 = vector.load %arg6[%c0_16, %c0_17] : memref<8x128xbf16, #tpu.memory_space<vmem>>, vector<8x128xbf16>
    tpu.vector_store %arg6[%c0_16, %c0_17], %27 {strides = array<i32>} : memref<8x128xbf16, #tpu.memory_space<vmem>>, vector<8x128xbf16>,
    return
  }
  func.func @transform_0(%arg0: i32) -> (i32, i32) {
    %c0_i32 = arith.constant 0 : i32
    %c0_i32_0 = arith.constant 0 : i32
    return %arg0, %c0_i32 : i32, i32
  }
  func.func @transform_1(%arg0: i32) -> (i32, i32) {
    %c0_i32 = arith.constant 0 : i32
    %c0_i32_0 = arith.constant 0 : i32
    %c0_i32_1 = arith.constant 0 : i32
    return %c0_i32, %c0_i32_0 : i32, i32
  }
  func.func @transform_2(%arg0: i32) -> (i32, i32) {
    %c0_i32 = arith.constant 0 : i32
    %c0_i32_0 = arith.constant 0 : i32
    %c0_i32_1 = arith.constant 0 : i32
    return %c0_i32, %c0_i32_0 : i32, i32
  }
  func.func @transform_3(%arg0: i32) -> (i32, i32) {
    %c0_i32 = arith.constant 0 : i32
    %c0_i32_0 = arith.constant 0 : i32
    %c0_i32_1 = arith.constant 0 : i32
    return %c0_i32, %c0_i32_0 : i32, i32
  }
  func.func @transform_4(%arg0: i32) -> (i32, i32) {
    %c0_i32 = arith.constant 0 : i32
    %c0_i32_0 = arith.constant 0 : i32
    %c0_i32_1 = arith.constant 0 : i32
    return %c0_i32, %c0_i32_0 : i32, i32
  }
  func.func @transform_5(%arg0: i32) -> (i32, i32) {
    %c0_i32 = arith.constant 0 : i32
    %c0_i32_0 = arith.constant 0 : i32
    return %arg0, %c0_i32 : i32, i32
  }
}

</mosaic_0001>

<llo_original>
// kernel: tpu_custom_call.1
$region0: #{tpu_custom_call.1}
  #allocation0 [shape = 'u32[]', space=smem, size = 0x4, offset = 0x4, fixed_abs, tag = 'smem constant byte address 0x4 - core index']
  #allocation1 [shape = 'u32[144,128]{1,0:T(1,128)}', space=vmem, size = 0x12000, scoped, tag = 'internal scratch']
  %s0 = inlined_call_operand.hbm [shape: f32[8,64], index: 0, kind: input, shape index: {}]
  %s1 = inlined_call_operand.hbm [shape: bf16[64,128], index: 1, kind: input, shape index: {}]
  %s2 = inlined_call_operand.vmem [shape: f32[1,128], index: 2, kind: input, shape index: {}]
  %s3 = inlined_call_operand.hbm [shape: bf16[128,128], index: 3, kind: input, shape index: {}]
  %s4 = inlined_call_operand.vmem [shape: f32[1,128], index: 4, kind: input, shape index: {}]
  %s5 = inlined_call_operand.hbm [shape: bf16[8,128], index: 5, kind: output, shape index: {}]
  %s6 = sld [smem:[#allocation0]]
  $region42: #{tpu_custom_call.1} parent=0
    _
  %s8 = ssub.s32 1, %s6
  %s9 = scalar_select 0, %s8, %s6
  $region1: #{tpu_custom_call.1} parent=0
    #allocation2 [shape = 'u8[4096]{0}', space=vmem, size = 0x1000, scoped, tag = 'input window, operand 0, single buffered']
    #allocation3 [shape = 's32[1]{0}', space=sflag, size = 0x4, scoped, tag = 'scoped memory for tpu_custom_call.1']
    #allocation4 [shape = 's32[1]{0}', space=sflag, size = 0x4, scoped, tag = 'scoped memory for tpu_custom_call.1']
    #allocation5 [shape = 'u8[16384]{0}', space=vmem, size = 0x4000, scoped, tag = 'input window, operand 1, single buffered']
    #allocation6 [shape = 's32[1]{0}', space=sflag, size = 0x4, scoped, tag = 'scoped memory for tpu_custom_call.1']
    #allocation7 [shape = 'u8[32768]{0}', space=vmem, size = 0x8000, scoped, tag = 'input window, operand 3, single buffered']
    #allocation8 [shape = 'u8[2048]{0}', space=vmem, size = 0x800, scoped, tag = 'output window, operand 0, single buffered']
    %10 = vsyncpa [#allocation3], 0
    %11 = vsyncpa [#allocation6], 0
    %12 = vsyncpa [#allocation4], 0
    // Predicated region
    $region2: #{tpu_custom_call.1} parent=1 // pred_check
      _
    $region3: #{tpu_custom_call.1} parent=1 // pred_check_branch
      %14 = sbr.rel (0) target = $region5
    $region4: #{tpu_custom_call.1} parent=1 // pred_region
      %s16 = ssub.s32 128, 128
      %17 = vsyncadd [#allocation3], %s16
      %s19 = sshll.u32 [#allocation2], 4
      %s20 = int_to_ptr.vmem [resolvable:$true] %s19
      %22 = dma.hbm_to_vmem [thread:$0]  %s0, 128, %s20, [#allocation3]
    $region5: #{tpu_custom_call.1} parent=1 // pred_fallthru
      _
    // Predicated region
    $region6: #{tpu_custom_call.1} parent=1 // pred_check
      _
    $region7: #{tpu_custom_call.1} parent=1 // pred_check_branch
      %24 = sbr.rel (0) target = $region9
    $region8: #{tpu_custom_call.1} parent=1 // pred_region
      %s26 = ssub.s32 512, 512
      %27 = vsyncadd [#allocation6], %s26
      %s28 = sshll.u32 [#allocation5], 4
      %s29 = int_to_ptr.vmem [resolvable:$true] %s28
      %34 = dma.hbm_to_vmem [thread:$0]  %s1, 512, %s29, [#allocation6], 64, 64, 4
    $region9: #{tpu_custom_call.1} parent=1 // pred_fallthru
      _
    // Predicated region
    $region10: #{tpu_custom_call.1} parent=1 // pred_check
      _
    $region11: #{tpu_custom_call.1} parent=1 // pred_check_branch
      %36 = sbr.rel (0) target = $region13
    $region12: #{tpu_custom_call.1} parent=1 // pred_region
      _
    $region13: #{tpu_custom_call.1} parent=1 // pred_fallthru
      _
    // Predicated region
    $region14: #{tpu_custom_call.1} parent=1 // pred_check
      _
    $region15: #{tpu_custom_call.1} parent=1 // pred_check_branch
      %38 = sbr.rel (0) target = $region17
    $region16: #{tpu_custom_call.1} parent=1 // pred_region
      %s40 = ssub.s32 1024, 1024
      %41 = vsyncadd [#allocation6], %s40
      %s42 = sshll.u32 [#allocation7], 4
      %s43 = int_to_ptr.vmem [resolvable:$true] %s42
      %48 = dma.hbm_to_vmem [thread:$0]  %s3, 1024, %s43, [#allocation6], 64, 64, 4
    $region17: #{tpu_custom_call.1} parent=1 // pred_fallthru
      _
    // Predicated region
    $region18: #{tpu_custom_call.1} parent=1 // pred_check
      _
    $region19: #{tpu_custom_call.1} parent=1 // pred_check_branch
      %50 = sbr.rel (0) target = $region21
    $region20: #{tpu_custom_call.1} parent=1 // pred_region
      _
    $region21: #{tpu_custom_call.1} parent=1 // pred_fallthru
      _
    // Predicated region
    $region22: #{tpu_custom_call.1} parent=1 // pred_check
      _
    $region23: #{tpu_custom_call.1} parent=1 // pred_check_branch
      %52 = sbr.rel (0) target = $region25
    $region24: #{tpu_custom_call.1} parent=1 // pred_region
      %53 = dma.done [#allocation3], 128
    $region25: #{tpu_custom_call.1} parent=1 // pred_fallthru
      _
    // Predicated region
    $region26: #{tpu_custom_call.1} parent=1 // pred_check
      _
    $region27: #{tpu_custom_call.1} parent=1 // pred_check_branch
      %55 = sbr.rel (0) target = $region29
    $region28: #{tpu_custom_call.1} parent=1 // pred_region
      %56 = dma.done [#allocation6], 512
    $region29: #{tpu_custom_call.1} parent=1 // pred_fallthru
      _
    // Predicated region
    $region30: #{tpu_custom_call.1} parent=1 // pred_check
      _
    $region31: #{tpu_custom_call.1} parent=1 // pred_check_branch
      %58 = sbr.rel (0) target = $region33
    $region32: #{tpu_custom_call.1} parent=1 // pred_region
      %59 = dma.done [#allocation6], 1024
    $region33: #{tpu_custom_call.1} parent=1 // pred_fallthru
      _
    %v61 = vld [vmem:[#allocation2] sm:$0xff]
    %v62 = vpack.c.bf16 %v61, %v61
    %v63 = vld [vmem:[#allocation5] sm:$0xf]
    %v64 = vld [vmem:[#allocation5 + $0x4] sm:$0xf]
    %v65 = vld [vmem:[#allocation5 + $0x8] sm:$0xf]
    %v66 = vld [vmem:[#allocation5 + $0xc] sm:$0xf]
    %v67 = vld [vmem:[#allocation5 + $0x10] sm:$0xf]
    %v68 = vld [vmem:[#allocation5 + $0x14] sm:$0xf]
    %v69 = vld [vmem:[#allocation5 + $0x18] sm:$0xf]
    %v70 = vld [vmem:[#allocation5 + $0x1c] sm:$0xf]
    %v71 = vld [vmem:[%s2] sm:$0x1]
    %v73 = vlaneseq
    %v74 = vshrl.u32 %v73, 7
    %v75 = vsub.s32 0, %v74
    %v76 = vrot.slane %v71, %v75
    %v86 = vunpack.c.l.b16 %v63
    %v87 = vunpack.c.l.b16 %v64
    %v88 = vunpack.c.l.b16 %v65
    %v89 = vunpack.c.l.b16 %v66
    %v90 = vunpack.c.l.b16 %v67
    %v91 = vunpack.c.l.b16 %v68
    %v92 = vunpack.c.l.b16 %v69
    %v93 = vunpack.c.l.b16 %v70
    %v94 = vpack.c.b16 %v87, %v86
    %v95 = vpack.c.b16 %v89, %v88
    %v96 = vpack.c.b16 %v91, %v90
    %v97 = vpack.c.b16 %v93, %v92
    %vm102 = vcmask 523264
    %v104 = vsel %vm102, %v62, 0
    %106 = vmatprep.subr.bf16.mxu0 0
    %107 = vmatpush1.bf16.msra.mxu0 %v94
    %108 = vmatprep.subr.bf16.mxu0 0
    %109 = vmatpush1.bf16.msra.mxu0 %v95
    %110 = vmatprep.subr.bf16.mxu0 0
    %111 = vmatpush1.bf16.msra.mxu0 %v96
    %112 = vmatprep.subr.bf16.mxu0 0
    %113 = vmatpush1.bf16.msra.mxu0 %v97
    %114 = vmatprep.subr.bf16.mxu0 0
    %115 = vmatpush1.bf16.msra.mxu0 0
    %116 = vmatprep.subr.bf16.mxu0 0
    %117 = vmatpush1.bf16.msra.mxu0 0
    %118 = vmatprep.subr.bf16.mxu0 0
    %119 = vmatpush1.bf16.msra.mxu0 0
    %120 = vmatprep.subr.bf16.mxu0 0
    %121 = vmatpush1.bf16.msra.mxu0 0
    %122 = vmatprep.subr.bf16.mxu0 0
    %123 = vmatpush1.bf16.msra.mxu0 0
    %124 = vmatprep.subr.bf16.mxu0 0
    %125 = vmatpush1.bf16.msra.mxu0 0
    %126 = vmatprep.subr.bf16.mxu0 0
    %127 = vmatpush1.bf16.msra.mxu0 0
    %128 = vmatprep.subr.bf16.mxu0 0
    %129 = vmatpush1.bf16.msra.mxu0 0
    %130 = vmatprep.subr.bf16.mxu0 0
    %131 = vmatpush1.bf16.msra.mxu0 0
    %132 = vmatprep.subr.bf16.mxu0 0
    %133 = vmatpush1.bf16.msra.mxu0 0
    %134 = vmatprep.subr.bf16.mxu0 0
    %135 = vmatpush1.bf16.msra.mxu0 0
    %136 = vmatprep.subr.bf16.mxu0 0
    %137 = vmatpush1.bf16.msra.mxu0 0
    %138 = vmatprep.mubr.bf16.mxu0 0
    %139 = vmatmul.mubr.bf16.gmra.mrb[0].mxu0 %v104
    %v140 = vpop.f32.mrb[0].mxu0
    %v141 = vadd.f32 %v76, %v140
    %v142 = vpop.f32.mrb[0].mxu0
    %v143 = vpop.f32.mrb[0].mxu0
    %v144 = vpop.f32.mrb[0].mxu0
    %145 = vdwg.mxu0
    %v146 = vmul.f32 %v141, 0.5
    %v147 = vtanh.pop %v146
    %v148 = vmul.f32 %v147, 0.5
    %v149 = vadd.f32 %v148, 0.5
    %v150 = vpack.c.bf16 %v149, %v149
    %v151 = vld [vmem:[#allocation7] sm:$0xf]
    %v152 = vld [vmem:[#allocation7 + $0x4] sm:$0xf]
    %v153 = vld [vmem:[#allocation7 + $0x8] sm:$0xf]
    %v154 = vld [vmem:[#allocation7 + $0xc] sm:$0xf]
    %v155 = vld [vmem:[#allocation7 + $0x10] sm:$0xf]
    %v156 = vld [vmem:[#allocation7 + $0x14] sm:$0xf]
    %v157 = vld [vmem:[#allocation7 + $0x18] sm:$0xf]
    %v158 = vld [vmem:[#allocation7 + $0x1c] sm:$0xf]
    %v159 = vld [vmem:[#allocation7 + $0x20] sm:$0xf]
    %v160 = vld [vmem:[#allocation7 + $0x24] sm:$0xf]
    %v161 = vld [vmem:[#allocation7 + $0x28] sm:$0xf]
    %v162 = vld [vmem:[#allocation7 + $0x2c] sm:$0xf]
    %v163 = vld [vmem:[#allocation7 + $0x30] sm:$0xf]
    %v164 = vld [vmem:[#allocation7 + $0x34] sm:$0xf]
    %v165 = vld [vmem:[#allocation7 + $0x38] sm:$0xf]
    %v166 = vld [vmem:[#allocation7 + $0x3c] sm:$0xf]
    %v167 = vld [vmem:[%s4] sm:$0x1]
    %v169 = vlaneseq
    %v170 = vshrl.u32 %v169, 7
    %v171 = vsub.s32 0, %v170
    %v172 = vrot.slane %v167, %v171
    %v190 = vunpack.c.l.b16 %v151
    %v191 = vunpack.c.l.b16 %v152
    %v192 = vunpack.c.l.b16 %v153
    %v193 = vunpack.c.l.b16 %v154
    %v194 = vunpack.c.l.b16 %v155
    %v195 = vunpack.c.l.b16 %v156
    %v196 = vunpack.c.l.b16 %v157
    %v197 = vunpack.c.l.b16 %v158
    %v198 = vunpack.c.l.b16 %v159
    %v199 = vunpack.c.l.b16 %v160
    %v200 = vunpack.c.l.b16 %v161
    %v201 = vunpack.c.l.b16 %v162
    %v202 = vunpack.c.l.b16 %v163
    %v203 = vunpack.c.l.b16 %v164
    %v204 = vunpack.c.l.b16 %v165
    %v205 = vunpack.c.l.b16 %v166
    %v206 = vpack.c.b16 %v191, %v190
    %v207 = vpack.c.b16 %v193, %v192
    %v208 = vpack.c.b16 %v195, %v194
    %v209 = vpack.c.b16 %v197, %v196
    %v210 = vpack.c.b16 %v199, %v198
    %v211 = vpack.c.b16 %v201, %v200
    %v212 = vpack.c.b16 %v203, %v202
    %v213 = vpack.c.b16 %v205, %v204
    %222 = vmatprep.subr.bf16.mxu0 0
    %223 = vmatpush1.bf16.msra.mxu0 %v206
    %224 = vmatprep.subr.bf16.mxu0 0
    %225 = vmatpush1.bf16.msra.mxu0 %v207
    %226 = vmatprep.subr.bf16.mxu0 0
    %227 = vmatpush1.bf16.msra.mxu0 %v208
    %228 = vmatprep.subr.bf16.mxu0 0
    %229 = vmatpush1.bf16.msra.mxu0 %v209
    %230 = vmatprep.subr.bf16.mxu0 0
    %231 = vmatpush1.bf16.msra.mxu0 %v210
    %232 = vmatprep.subr.bf16.mxu0 0
    %233 = vmatpush1.bf16.msra.mxu0 %v211
    %234 = vmatprep.subr.bf16.mxu0 0
    %235 = vmatpush1.bf16.msra.mxu0 %v212
    %236 = vmatprep.subr.bf16.mxu0 0
    %237 = vmatpush1.bf16.msra.mxu0 %v213
    %238 = vmatprep.subr.bf16.mxu0 0
    %239 = vmatpush1.bf16.msra.mxu0 0
    %240 = vmatprep.subr.bf16.mxu0 0
    %241 = vmatpush1.bf16.msra.mxu0 0
    %242 = vmatprep.subr.bf16.mxu0 0
    %243 = vmatpush1.bf16.msra.mxu0 0
    %244 = vmatprep.subr.bf16.mxu0 0
    %245 = vmatpush1.bf16.msra.mxu0 0
    %246 = vmatprep.subr.bf16.mxu0 0
    %247 = vmatpush1.bf16.msra.mxu0 0
    %248 = vmatprep.subr.bf16.mxu0 0
    %249 = vmatpush1.bf16.msra.mxu0 0
    %250 = vmatprep.subr.bf16.mxu0 0
    %251 = vmatpush1.bf16.msra.mxu0 0
    %252 = vmatprep.subr.bf16.mxu0 0
    %253 = vmatpush1.bf16.msra.mxu0 0
    %254 = vmatprep.mubr.bf16.mxu0 0
    %255 = vmatmul.mubr.bf16.gmra.mrb[0].mxu0 %v150
    %v256 = vpop.f32.mrb[0].mxu0
    %v257 = vadd.f32 %v172, %v256
    %v258 = vpop.f32.mrb[0].mxu0
    %v259 = vpop.f32.mrb[0].mxu0
    %v260 = vpop.f32.mrb[0].mxu0
    %261 = vdwg.mxu0
    %v262 = vmul.f32 %v257, 0.5
    %v263 = vtanh.pop %v262
    %v264 = vmul.f32 %v263, 0.5
    %v265 = vadd.f32 %v264, 0.5
    %v266 = vpack.c.bf16 %v265, %v265
    %267 = vst [vmem:[#allocation8] sm:$0xf] %v266
    // Predicated region
    $region34: #{tpu_custom_call.1} parent=1 // pred_check
      _
    $region35: #{tpu_custom_call.1} parent=1 // pred_check_branch
      %269 = sbr.rel (0) target = $region37
    $region36: #{tpu_custom_call.1} parent=1 // pred_region
      %s271 = ssub.s32 64, 64
      %272 = vsyncadd [#allocation4], %s271
      %s274 = sshll.u32 [#allocation8], 4
      %s275 = int_to_ptr.vmem [resolvable:$true] %s274
      %277 = dma.vmem_to_hbm [thread:$0]  %s275, 64, %s5, [#allocation4]
    $region37: #{tpu_custom_call.1} parent=1 // pred_fallthru
      _
    // Predicated region
    $region38: #{tpu_custom_call.1} parent=1 // pred_check
      _
    $region39: #{tpu_custom_call.1} parent=1 // pred_check_branch
      %279 = sbr.rel (0) target = $region41
    $region40: #{tpu_custom_call.1} parent=1 // pred_region
      %280 = dma.done [#allocation4], 64
    $region41: #{tpu_custom_call.1} parent=1 // pred_fallthru
      _
    %281 = vsyncpa [#allocation3], 1
    %282 = vsyncpa [#allocation6], 1
    %283 = vsyncpa [#allocation4], 1

</llo_original>
